<compile_context>
chip_gen: v6e
topology: v6e:2x2x1
jax: 0.10.0
libtpu: 0.0.40
codegen_flags: <defaults>
</compile_context>

<pallas_src>
import jax
import jax.numpy as jnp
from jax.experimental import pallas as pl
from jax.experimental.pallas import tpu as pltpu


def item_kernel(x_ref, w_ref, out_ref):
    # x is int8 with 0/1 entries -> exact after cast. One fused MXU matmul:
    # left half of the result = projections, right half = per-segment row-sum
    # denominators broadcast over the output columns.
    x = x_ref[...].astype(jnp.float32)
    both = jnp.dot(x, w_ref[...], preferred_element_type=jnp.float32)
    n = out_ref.shape[-1]
    out_ref[...] = both[:, :n] / both[:, n:]   # exact f32 divide (keeps 1e-5 tol)


def _round_up(x, m):
    return ((x + m - 1) // m) * m


def _item_forward_impl(rate_idx, genre_idx, director_idx, actors_idx, params,
                       batch_block=4096):
    w_aug = params["w_aug"]                      # [K_pad, 2*4D], built once
    num_rate = params["emb_rate"].shape[0]
    K_pad = w_aug.shape[0]
    N = w_aug.shape[1] // 2                      # 4 * embedding_dim
    B = rate_idx.shape[0]

    # --- batch tiling -------------------------------------------------------
    # bb: multiple of 32 (int8 sublane packing), capped at batch_block, and for
    # non-trivial batches capped at ceil(B/2) so the grid always has >= 2 steps
    # (lets megacore / v7x's two TensorCores split rows).
    if B <= 64:
        bb = _round_up(max(B, 1), 32)
    else:
        bb = _round_up(pl.cdiv(B, 2), 32)
    bb = min(bb, batch_block)
    bb = max(32, (bb // 32) * 32)
    B_pad = _round_up(B, bb)                     # exact block division, no masking
    grid = (B_pad // bb,)

    # --- wrapper glue (fused by XLA under jit) ------------------------------
    # Fused input row [one_hot(rate) | genre | director | actors | 0-pad]
    # assembled directly as int8 (all values 0/1 -> exact, 4x less HBM traffic).
    rate_oh = jax.nn.one_hot(rate_idx, num_rate, dtype=jnp.int8)
    x = jnp.concatenate(
        [rate_oh,
         genre_idx.astype(jnp.int8),
         director_idx.astype(jnp.int8),
         actors_idx.astype(jnp.int8)],
        axis=1)
    x_fused = jnp.pad(x, ((0, B_pad - B), (0, K_pad - x.shape[1])))
    # TODO(synk): for very large B, feed the raw multi-hots (pre-concatenated
    # int8, produced where the inputs are created) straight into the kernel to
    # avoid this wrapper -> HBM round-trip entirely.

    cost = pl.CostEstimate(
        flops=2 * B_pad * K_pad * (2 * N),
        transcendentals=0,
        bytes_accessed=B_pad * K_pad * 1 + B_pad * N * 4 + K_pad * 2 * N * 4,
    )

    out = pl.pallas_call(
        item_kernel,
        out_shape=jax.ShapeDtypeStruct((B_pad, N), jnp.float32),
        grid=grid,
        in_specs=[
            pl.BlockSpec((bb, K_pad), lambda i: (i, 0)),
            pl.BlockSpec((K_pad, 2 * N), lambda i: (0, 0)),
        ],
        out_specs=pl.BlockSpec((bb, N), lambda i: (i, 0)),
        compiler_params=pltpu.CompilerParams(
            dimension_semantics=("parallel",)),
        cost_estimate=cost,
    )(x_fused, w_aug)

    return out if B_pad == B else out[:B]


item_forward = jax.jit(_item_forward_impl, static_argnames=("batch_block",))


def init_params(key, num_rate, num_genre, num_director, num_actor, embedding_dim):
    k0, k1, k2, k3 = jax.random.split(key, 4)
    # Deterministic synthetic init (shapes match the PyTorch module).
    emb_rate = jax.random.normal(k0, (num_rate, embedding_dim), jnp.float32)

    def linear_w(k, fan_in):
        bound = 1.0 / jnp.sqrt(fan_in)
        # Stored transposed: [in_features, embedding_dim]
        return jax.random.uniform(k, (fan_in, embedding_dim), jnp.float32,
                                  minval=-bound, maxval=bound)

    w_genre = linear_w(k1, num_genre)
    w_director = linear_w(k2, num_director)
    w_actor = linear_w(k3, num_actor)

    # Build the fused/augmented weight ONCE (not per call).
    D = embedding_dim
    sizes = (num_rate, num_genre, num_director, num_actor)
    blocks = (emb_rate, w_genre, w_director, w_actor)
    K = sum(sizes)
    K_pad = ((K + 127) // 128) * 128
    N = 4 * D

    w_aug = jnp.zeros((K_pad, 2 * N), jnp.float32)
    off = 0
    for s, (sz, blk) in enumerate(zip(sizes, blocks)):
        # Block-diagonal projection weights (left half).
        w_aug = w_aug.at[off:off + sz, s * D:(s + 1) * D].set(blk)
        # Segment-membership mask for the denominators (right half).
        w_aug = w_aug.at[off:off + sz, N + s * D:N + (s + 1) * D].set(1.0)
        off += sz

    return {
        "emb_rate": emb_rate,
        "w_genre": w_genre,
        "w_director": w_director,
        "w_actor": w_actor,
        "w_aug": w_aug,
    }


def reference_forward(rate_idx, genre_idx, director_idx, actors_idx, params):
    rate_emb = params["emb_rate"][rate_idx]
    g = genre_idx.astype(jnp.float32)
    d = director_idx.astype(jnp.float32)
    a = actors_idx.astype(jnp.float32)
    genre_emb = (g @ params["w_genre"]) / jnp.sum(g, 1, keepdims=True)
    dir_emb = (d @ params["w_director"]) / jnp.sum(d, 1, keepdims=True)
    act_emb = (a @ params["w_actor"]) / jnp.sum(a, 1, keepdims=True)
    return jnp.concatenate([rate_emb, genre_emb, dir_emb, act_emb], axis=1)


if __name__ == "__main__":
    # Small synthetic config matching the PyTorch module.
    num_rate, num_genre, num_director, num_actor = 6, 25, 32, 40
    embedding_dim = 32

    key = jax.random.PRNGKey(0)
    kp, kr, kg, kd, ka = jax.random.split(key, 5)

    params = init_params(kp, num_rate, num_genre, num_director, num_actor,
                         embedding_dim)

    def make_inputs(batch, kr_, kg_, kd_, ka_):
        rate_idx = jax.random.randint(kr_, (batch,), 0, num_rate, dtype=jnp.int32)

        def multi_hot(k, n):
            m = (jax.random.uniform(k, (batch, n)) < 0.3).astype(jnp.int32)
            # guarantee each row has at least one active feature (avoid /0, as
            # in any sane input to the original module)
            return m.at[:, 0].set(1)

        return (rate_idx, multi_hot(kg_, num_genre),
                multi_hot(kd_, num_director), multi_hot(ka_, num_actor))

    # Case 1: tiny batch -> single 32-row tile (B padded to 32, output sliced).
    batch = 8
    r, g, d, a = make_inputs(batch, kr, kg, kd, ka)
    out = jax.block_until_ready(item_forward(r, g, d, a, params))
    ref = reference_forward(r, g, d, a, params)
    assert out.shape == (batch, 4 * embedding_dim)
    assert jnp.allclose(out, ref, atol=1e-5, rtol=1e-5), "mismatch vs reference (B=8)"

    # Case 2: larger batch -> multi-step batch-parallel grid (128-row tiles, 2 steps).
    batch = 256
    kr2, kg2, kd2, ka2 = jax.random.split(jax.random.PRNGKey(1), 4)
    r, g, d, a = make_inputs(batch, kr2, kg2, kd2, ka2)
    out = jax.block_until_ready(item_forward(r, g, d, a, params))
    ref = reference_forward(r, g, d, a, params)
    assert out.shape == (batch, 4 * embedding_dim)
    assert jnp.allclose(out, ref, atol=1e-5, rtol=1e-5), "mismatch vs reference (B=256)"

    # Case 3: non-divisible batch -> padded rows + output slice-back.
    batch = 100
    kr3, kg3, kd3, ka3 = jax.random.split(jax.random.PRNGKey(2), 4)
    r, g, d, a = make_inputs(batch, kr3, kg3, kd3, ka3)
    out = jax.block_until_ready(item_forward(r, g, d, a, params))
    ref = reference_forward(r, g, d, a, params)
    assert out.shape == (batch, 4 * embedding_dim)
    assert jnp.allclose(out, ref, atol=1e-5, rtol=1e-5), "mismatch vs reference (B=100)"

    print("KERNEL_OK")
</pallas_src>

<mosaic_0001>
module attributes {stable_mosaic.version = 11 : i64} {
  func.func @item_kernel(%arg0: i32, %arg1: memref<32x128xi8, #tpu.memory_space<vmem>>, %arg2: memref<128x256xf32, #tpu.memory_space<vmem>>, %arg3: memref<32x128xf32, #tpu.memory_space<vmem>>) attributes {dimension_semantics = [#tpu.dimension_semantics<parallel>], iteration_bounds = array<i64: 1>, scalar_prefetch = 0 : i64, scratch_operands = 0 : i64, tpu.core_type = #tpu.core_type<tc>, window_params = [{transform_indices = @transform_0, window_bounds = array<i64: 32, 128>}, {pipeline_mode = #tpu.pipeline_mode<synchronous>, transform_indices = @transform_1, window_bounds = array<i64: 128, 256>}, {transform_indices = @transform_2, window_bounds = array<i64: 32, 128>}]} {
    %c0 = arith.constant 0 : index
    %c0_0 = arith.constant 0 : index
    %0 = vector.load %arg1[%c0, %c0_0] : memref<32x128xi8, #tpu.memory_space<vmem>>, vector<32x128xi8>
    %1 = arith.sitofp %0 : vector<32x128xi8> to vector<32x128xf32>
    %c0_1 = arith.constant 0 : index
    %c0_2 = arith.constant 0 : index
    %2 = vector.load %arg2[%c0_1, %c0_2] : memref<128x256xf32, #tpu.memory_space<vmem>>, vector<128x256xf32>
    %cst = arith.constant dense<0.000000e+00> : vector<32x256xf32>
    %3 = tpu.matmul %1, %2, %cst {dimension_numbers = #tpu.dot_dimension_numbers<[1], [0], [0], [1], [0, 0, 1, 1], [], []>} : vector<32x128xf32>, vector<128x256xf32>, vector<32x256xf32> -> vector<32x256xf32>
    %4 = vector.extract_strided_slice %3 {offsets = [0, 0], sizes = [32, 128], strides = [1, 1]} : vector<32x256xf32> to vector<32x128xf32>
    %5 = vector.extract_strided_slice %3 {offsets = [0, 128], sizes = [32, 128], strides = [1, 1]} : vector<32x256xf32> to vector<32x128xf32>
    %6 = arith.divf %4, %5 : vector<32x128xf32>
    %c0_3 = arith.constant 0 : index
    %c0_4 = arith.constant 0 : index
    %7 = vector.load %arg3[%c0_3, %c0_4] : memref<32x128xf32, #tpu.memory_space<vmem>>, vector<32x128xf32>
    tpu.vector_store %arg3[%c0_3, %c0_4], %6 {strides = array<i32>} : memref<32x128xf32, #tpu.memory_space<vmem>>, vector<32x128xf32>,
    return
  }
  func.func @transform_0(%arg0: i32) -> (i32, i32) {
    %c0_i32 = arith.constant 0 : i32
    %c0_i32_0 = arith.constant 0 : i32
    return %arg0, %c0_i32 : i32, i32
  }
  func.func @transform_1(%arg0: i32) -> (i32, i32) {
    %c0_i32 = arith.constant 0 : i32
    %c0_i32_0 = arith.constant 0 : i32
    %c0_i32_1 = arith.constant 0 : i32
    return %c0_i32, %c0_i32_0 : i32, i32
  }
  func.func @transform_2(%arg0: i32) -> (i32, i32) {
    %c0_i32 = arith.constant 0 : i32
    %c0_i32_0 = arith.constant 0 : i32
    return %arg0, %c0_i32 : i32, i32
  }
}

</mosaic_0001>

<llo_original>
// kernel: _item_forward_impl.1
$region0: #{_item_forward_impl.1}
  #allocation0 [shape = 'u32[]', space=smem, size = 0x4, offset = 0x4, fixed_abs, tag = 'smem constant byte address 0x4 - core index']
  #allocation1 [shape = 'u32[144,128]{1,0:T(1,128)}', space=vmem, size = 0x12000, scoped, tag = 'internal scratch']
  %s0 = inlined_call_operand.vmem [shape: s8[32,128], index: 0, kind: input, shape index: {}]
  %s1 = inlined_call_operand.hbm [shape: f32[128,256], index: 1, kind: input, shape index: {}]
  %s2 = inlined_call_operand.vmem [shape: f32[32,128], index: 2, kind: output, shape index: {}]
  %s3 = sld [smem:[#allocation0]]
  $region22: #{_item_forward_impl.1} parent=0
    _
  %s5 = ssub.s32 1, %s3
  %s6 = scalar_select 0, %s5, %s3
  $region1: #{_item_forward_impl.1} parent=0
    #allocation2 [shape = 'u8[131072]{0}', space=vmem, size = 0x20000, scoped, tag = 'input window, operand 1, single buffered']
    #allocation3 [shape = 's32[1]{0}', space=sflag, size = 0x4, scoped, tag = 'scoped memory for _item_forward_impl.1']
    %7 = vsyncpa [#allocation3], 0
    // Predicated region
    $region2: #{_item_forward_impl.1} parent=1 // pred_check
      _
    $region3: #{_item_forward_impl.1} parent=1 // pred_check_branch
      %9 = sbr.rel (0) target = $region5
    $region4: #{_item_forward_impl.1} parent=1 // pred_region
      _
    $region5: #{_item_forward_impl.1} parent=1 // pred_fallthru
      _
    // Predicated region
    $region6: #{_item_forward_impl.1} parent=1 // pred_check
      _
    $region7: #{_item_forward_impl.1} parent=1 // pred_check_branch
      %11 = sbr.rel (0) target = $region9
    $region8: #{_item_forward_impl.1} parent=1 // pred_region
      %s13 = ssub.s32 4096, 4096
      %14 = vsyncadd [#allocation3], %s13
      %s15 = sshll.u32 [#allocation2], 4
      %s16 = int_to_ptr.vmem [resolvable:$true] %s15
      %21 = dma.hbm_to_vmem [thread:$0]  %s1, 4096, %s16, [#allocation3], 256, 256, 16
    $region9: #{_item_forward_impl.1} parent=1 // pred_fallthru
      _
    // Predicated region
    $region10: #{_item_forward_impl.1} parent=1 // pred_check
      _
    $region11: #{_item_forward_impl.1} parent=1 // pred_check_branch
      %23 = sbr.rel (0) target = $region13
    $region12: #{_item_forward_impl.1} parent=1 // pred_region
      %24 = dma.done [#allocation3], 4096
    $region13: #{_item_forward_impl.1} parent=1 // pred_fallthru
      _
    %v25 = vld [vmem:[%s0] sm:$0xff]
    %v26 = vunpack.c.0.s8 %v25
    %v27 = vunpack.c.1.s8 %v25
    %v28 = vunpack.c.2.s8 %v25
    %v29 = vunpack.c.3.s8 %v25
    %v30 = vcvt.s32.f32 %v26
    %v31 = vcvt.s32.f32 %v27
    %v32 = vcvt.s32.f32 %v28
    %v33 = vcvt.s32.f32 %v29
    %v34 = vld [vmem:[#allocation2] sm:$0xff]
    %v35 = vld [vmem:[#allocation2 + $0x8] sm:$0xff]
    %v36 = vld [vmem:[#allocation2 + $0x10] sm:$0xff]
    %v37 = vld [vmem:[#allocation2 + $0x18] sm:$0xff]
    %v38 = vld [vmem:[#allocation2 + $0x20] sm:$0xff]
    %v39 = vld [vmem:[#allocation2 + $0x28] sm:$0xff]
    %v40 = vld [vmem:[#allocation2 + $0x30] sm:$0xff]
    %v41 = vld [vmem:[#allocation2 + $0x38] sm:$0xff]
    %v42 = vld [vmem:[#allocation2 + $0x40] sm:$0xff]
    %v43 = vld [vmem:[#allocation2 + $0x48] sm:$0xff]
    %v44 = vld [vmem:[#allocation2 + $0x50] sm:$0xff]
    %v45 = vld [vmem:[#allocation2 + $0x58] sm:$0xff]
    %v46 = vld [vmem:[#allocation2 + $0x60] sm:$0xff]
    %v47 = vld [vmem:[#allocation2 + $0x68] sm:$0xff]
    %v48 = vld [vmem:[#allocation2 + $0x70] sm:$0xff]
    %v49 = vld [vmem:[#allocation2 + $0x78] sm:$0xff]
    %v50 = vld [vmem:[#allocation2 + $0x80] sm:$0xff]
    %v51 = vld [vmem:[#allocation2 + $0x88] sm:$0xff]
    %v52 = vld [vmem:[#allocation2 + $0x90] sm:$0xff]
    %v53 = vld [vmem:[#allocation2 + $0x98] sm:$0xff]
    %v54 = vld [vmem:[#allocation2 + $0xa0] sm:$0xff]
    %v55 = vld [vmem:[#allocation2 + $0xa8] sm:$0xff]
    %v56 = vld [vmem:[#allocation2 + $0xb0] sm:$0xff]
    %v57 = vld [vmem:[#allocation2 + $0xb8] sm:$0xff]
    %v58 = vld [vmem:[#allocation2 + $0xc0] sm:$0xff]
    %v59 = vld [vmem:[#allocation2 + $0xc8] sm:$0xff]
    %v60 = vld [vmem:[#allocation2 + $0xd0] sm:$0xff]
    %v61 = vld [vmem:[#allocation2 + $0xd8] sm:$0xff]
    %v62 = vld [vmem:[#allocation2 + $0xe0] sm:$0xff]
    %v63 = vld [vmem:[#allocation2 + $0xe8] sm:$0xff]
    %v64 = vld [vmem:[#allocation2 + $0xf0] sm:$0xff]
    %v65 = vld [vmem:[#allocation2 + $0xf8] sm:$0xff]
    %66 = vmatprep.subr.mxu0 %v65
    %67 = vmatpush1.msra.mxu0 %v64
    %68 = vmatprep.subr.mxu0 %v63
    %69 = vmatpush1.msra.mxu0 %v62
    %70 = vmatprep.subr.mxu0 %v61
    %71 = vmatpush1.msra.mxu0 %v60
    %72 = vmatprep.subr.mxu0 %v59
    %73 = vmatpush1.msra.mxu0 %v58
    %74 = vmatprep.subr.mxu0 %v57
    %75 = vmatpush1.msra.mxu0 %v56
    %76 = vmatprep.subr.mxu0 %v55
    %77 = vmatpush1.msra.mxu0 %v54
    %78 = vmatprep.subr.mxu0 %v53
    %79 = vmatpush1.msra.mxu0 %v52
    %80 = vmatprep.subr.mxu0 %v51
    %81 = vmatpush1.msra.mxu0 %v50
    %82 = vmatprep.subr.mxu0 %v49
    %83 = vmatpush1.msra.mxu0 %v48
    %84 = vmatprep.subr.mxu0 %v47
    %85 = vmatpush1.msra.mxu0 %v46
    %86 = vmatprep.subr.mxu0 %v45
    %87 = vmatpush1.msra.mxu0 %v44
    %88 = vmatprep.subr.mxu0 %v43
    %89 = vmatpush1.msra.mxu0 %v42
    %90 = vmatprep.subr.mxu0 %v41
    %91 = vmatpush1.msra.mxu0 %v40
    %92 = vmatprep.subr.mxu0 %v39
    %93 = vmatpush1.msra.mxu0 %v38
    %94 = vmatprep.subr.mxu0 %v37
    %95 = vmatpush1.msra.mxu0 %v36
    %96 = vmatprep.subr.mxu0 %v35
    %97 = vmatpush1.msra.mxu0 %v34
    %98 = vmatprep.subr.mxu0 0.0
    %99 = vmatpush2.msra.mxu0 0.0
    %100 = vmatprep.subr.mxu0 0.0
    %101 = vmatpush2.msra.mxu0 0.0
    %102 = vmatprep.subr.mxu0 0.0
    %103 = vmatpush2.msra.mxu0 0.0
    %104 = vmatprep.subr.mxu0 0.0
    %105 = vmatpush2.msra.mxu0 0.0
    %106 = vmatprep.subr.mxu0 0.0
    %107 = vmatpush2.msra.mxu0 0.0
    %108 = vmatprep.subr.mxu0 0.0
    %109 = vmatpush2.msra.mxu0 0.0
    %110 = vmatprep.subr.mxu0 0.0
    %111 = vmatpush2.msra.mxu0 0.0
    %112 = vmatprep.subr.mxu0 0.0
    %113 = vmatpush2.msra.mxu0 0.0
    %114 = vmatprep.subr.mxu0 0.0
    %115 = vmatpush2.msra.mxu0 0.0
    %116 = vmatprep.subr.mxu0 0.0
    %117 = vmatpush2.msra.mxu0 0.0
    %118 = vmatprep.subr.mxu0 0.0
    %119 = vmatpush2.msra.mxu0 0.0
    %120 = vmatprep.subr.mxu0 0.0
    %121 = vmatpush2.msra.mxu0 0.0
    %122 = vmatprep.subr.mxu0 0.0
    %123 = vmatpush2.msra.mxu0 0.0
    %124 = vmatprep.subr.mxu0 0.0
    %125 = vmatpush2.msra.mxu0 0.0
    %126 = vmatprep.subr.mxu0 0.0
    %127 = vmatpush2.msra.mxu0 0.0
    %128 = vmatprep.subr.mxu0 0.0
    %129 = vmatpush2.msra.mxu0 0.0
    %130 = vmatprep.mubr.f32.mxu0 0.0
    %131 = vmatmul.mubr.f32.gmra.mxu0 %v30
    %v132 = vpop.f32.mrf.mxu0
    %v133 = vadd.f32 0.0, %v132
    %v134 = vpop.f32.mrf.mxu0
    %v135 = vadd.f32 0.0, %v134
    %136 = vmatprep.mubr.f32.mxu0 0.0
    %137 = vmatmul.mubr.f32.gmra.mxu0 %v31
    %v138 = vpop.f32.mrf.mxu0
    %v139 = vadd.f32 0.0, %v138
    %v140 = vpop.f32.mrf.mxu0
    %v141 = vadd.f32 0.0, %v140
    %142 = vmatprep.mubr.f32.mxu0 0.0
    %143 = vmatmul.mubr.f32.gmra.mxu0 %v32
    %v144 = vpop.f32.mrf.mxu0
    %v145 = vadd.f32 0.0, %v144
    %v146 = vpop.f32.mrf.mxu0
    %v147 = vadd.f32 0.0, %v146
    %148 = vmatprep.mubr.f32.mxu0 0.0
    %149 = vmatmul.mubr.f32.gmra.mxu0 %v33
    %v150 = vpop.f32.mrf.mxu0
    %v151 = vadd.f32 0.0, %v150
    %v152 = vpop.f32.mrf.mxu0
    %v153 = vadd.f32 0.0, %v152
    %154 = vdwg.mxu0
    %v155 = vrcp.pop %v135
    %v156 = vmul.f32 %v133, %v155
    %v157 = vrcp.pop %v141
    %v158 = vmul.f32 %v139, %v157
    %v159 = vrcp.pop %v147
    %v160 = vmul.f32 %v145, %v159
    %v161 = vrcp.pop %v153
    %v162 = vmul.f32 %v151, %v161
    %163 = vst [vmem:[%s2] sm:$0xff] %v156
    %164 = vst [vmem:[%s2 + $0x8] sm:$0xff] %v158
    %165 = vst [vmem:[%s2 + $0x10] sm:$0xff] %v160
    %166 = vst [vmem:[%s2 + $0x18] sm:$0xff] %v162
    // Predicated region
    $region14: #{_item_forward_impl.1} parent=1 // pred_check
      _
    $region15: #{_item_forward_impl.1} parent=1 // pred_check_branch
      %168 = sbr.rel (0) target = $region17
    $region16: #{_item_forward_impl.1} parent=1 // pred_region
      _
    $region17: #{_item_forward_impl.1} parent=1 // pred_fallthru
      _
    // Predicated region
    $region18: #{_item_forward_impl.1} parent=1 // pred_check
      _
    $region19: #{_item_forward_impl.1} parent=1 // pred_check_branch
      %170 = sbr.rel (0) target = $region21
    $region20: #{_item_forward_impl.1} parent=1 // pred_region
      _
    $region21: #{_item_forward_impl.1} parent=1 // pred_fallthru
      _
    %171 = vsyncpa [#allocation3], 1

</llo_original>
